<compile_context>
chip_gen: v7x
topology: tpu7x:2x2x1
jax: 0.10.0
libtpu: 0.0.40
codegen_flags: <defaults>
</compile_context>

<pallas_src>
import jax
import jax.numpy as jnp
from jax import lax
from jax.experimental import pallas as pl
from jax.experimental.pallas import tpu as pltpu


_VMEM_BUDGET = 24 * 1024 * 1024     # conservative vs the 32 MiB scoped default (v7x)


def _round_up(v, m):
    return -(-v // m) * m


def _padded_block_bytes(shape, itemsize):
    """Bytes of one VMEM block buffer including (8, 128) tile padding."""
    dims = list(shape)
    dims[-1] = _round_up(dims[-1], 128)
    if len(dims) >= 2:
        dims[-2] = _round_up(dims[-2], 8)
    n = 1
    for d in dims:
        n *= d
    return n * itemsize


def _vmem_estimate(block_shapes, itemsize):
    # Every pipelined block is double-buffered by Pallas.
    return 2 * sum(_padded_block_bytes(s, itemsize) for s in block_shapes)


def _pick_tiles_lane(D, B, K, W, itemsize):
    """(TB, TD) for the D-on-lanes path.  TD is a multiple of 128 (or full D)."""
    def per_lane(tb):          # double-buffered bytes per lane of TD
        return 2 * itemsize * (tb * K + K * W + W + tb * W)

    TB = min(B, 256)
    while TB > 8 and 128 * per_lane(TB) > _VMEM_BUDGET:
        TB //= 2
    TB = max(1, min(TB, B))

    td = max(128, min(2048, (_VMEM_BUDGET // max(per_lane(TB), 1)) // 128 * 128))
    if D > 128:
        # Keep >= 2 grid steps along D so both v7x TensorCores get work.
        td = min(td, max(128, _round_up(-(-D // 2), 128)))
    if td >= D:
        td = D
    return TB, td


def _pick_tiles_mxu(D, B, K, W, itemsize):
    """(TB, TD) for the MXU path.  TD is a multiple of 8 (or full D)."""
    def per_d(tb):
        return 2 * itemsize * (tb * K + K * W + W + tb * W)

    TB = min(B, 512)
    while TB > 128 and 8 * per_d(TB) > _VMEM_BUDGET:
        TB //= 2
    TB = max(1, min(TB, B))

    td = max(8, min(1024, (_VMEM_BUDGET // max(per_d(TB), 1)) // 8 * 8))
    if D > 8:
        td = min(td, max(8, _round_up(-(-D // 2), 8)))
    if td >= D:
        td = D
    return TB, td


def _lane_kernel(use_bias, unroll_k):
    """D-on-lanes VPU MAC.  Refs: x (TB,K,TD), w (K,W,TD), [b (W,TD)], out (TB,W,TD)."""

    def compute(x_ref, w_ref):
        TB, K, TD = x_ref.shape
        W = w_ref.shape[1]
        if unroll_k:
            # K is small: static unroll keeps the LLO scheduler's visibility.
            x = x_ref[...].astype(jnp.float32)      # cast per-tile (v5e: no bf16 VPU)
            wt = w_ref[...].astype(jnp.float32)
            acc = x[:, 0:1, :] * wt[0:1, :, :]      # (TB,1,TD)*(1,W,TD) -> (TB,W,TD)
            for k in range(1, K):
                acc = acc + x[:, k:k + 1, :] * wt[k:k + 1, :, :]
            return acc

        def body(k, acc):
            xk = x_ref[:, pl.ds(k, 1), :].astype(jnp.float32)   # (TB,1,TD)
            wk = w_ref[pl.ds(k, 1), :, :].astype(jnp.float32)   # (1,W,TD)
            return acc + xk * wk

        return lax.fori_loop(0, K, body, jnp.zeros((TB, W, TD), jnp.float32))

    if use_bias:
        def kernel(x_ref, w_ref, b_ref, o_ref):
            acc = compute(x_ref, w_ref)
            acc = acc + b_ref[...].astype(jnp.float32)[None, :, :]   # (W,TD) bcast over TB
            o_ref[...] = jnp.maximum(acc, 0.0).astype(o_ref.dtype)
    else:
        def kernel(x_ref, w_ref, o_ref):
            acc = compute(x_ref, w_ref)
            o_ref[...] = jnp.maximum(acc, 0.0).astype(o_ref.dtype)
    return kernel


def _mxu_kernel(use_bias):
    """Native-layout MXU path.  Refs: x (TB,TD,K), w (TD,K,W), [b (TD,W)], out (TB,TD,W)."""

    def compute(x_ref, w_ref):
        return jnp.einsum("btk,tkw->btw", x_ref[...], w_ref[...],
                          preferred_element_type=jnp.float32)

    if use_bias:
        def kernel(x_ref, w_ref, b_ref, o_ref):
            acc = compute(x_ref, w_ref) + b_ref[...].astype(jnp.float32)
            o_ref[...] = jnp.maximum(acc, 0.0).astype(o_ref.dtype)
    else:
        def kernel(x_ref, w_ref, o_ref):
            acc = compute(x_ref, w_ref)
            o_ref[...] = jnp.maximum(acc, 0.0).astype(o_ref.dtype)
    return kernel


def sep_dense_forward(x, w, b=None, use_bias=True):
    """x: (B, D, 1, K), w: (D, K, W), b: (D, K).  Returns (B, D, W) in the model dtype."""
    B, D, one, K = x.shape
    assert one == 1, "dim 2 of x must be 1 (squeezed by the reference module)"
    Dw, Kw, W = w.shape
    assert Dw == D and Kw == K
    if use_bias:
        assert b is not None and b.shape == (D, K)
        assert K == W, "module's bias broadcast requires window_size == output_size"

    out_dtype = jnp.result_type(x.dtype, w.dtype)
    itemsize = max(x.dtype.itemsize, w.dtype.itemsize)

    cost = pl.CostEstimate(
        flops=2 * B * D * K * W,
        transcendentals=0,
        bytes_accessed=int(x.size * x.dtype.itemsize + w.size * w.dtype.itemsize
                           + (b.size * b.dtype.itemsize if use_bias else 0)
                           + B * D * W * jnp.dtype(out_dtype).itemsize))

    # MXU path only pays when both the batch and the output width fill the MXU;
    # also fall back to it if the lane-path weight tile could never fit VMEM.
    lane_ok = 2 * 4 * 128 * (8 * K + K * W + W + 8 * W) <= _VMEM_BUDGET
    use_mxu = (B >= 128 and W >= 128) or not lane_ok

    if use_mxu:
        x3 = x.reshape(B, D, K)                         # free view of the squeezed dim
        TB, td = _pick_tiles_mxu(D, B, K, W, itemsize)
        n_d, n_b = pl.cdiv(D, td), pl.cdiv(B, TB)

        block_shapes = [(TB, td, K), (td, K, W), (TB, td, W)]
        in_specs = [pl.BlockSpec((TB, td, K), lambda d, bb: (bb, d, 0)),
                    pl.BlockSpec((td, K, W), lambda d, bb: (d, 0, 0))]
        args = [x3, w]
        if use_bias:
            in_specs.append(pl.BlockSpec((td, W), lambda d, bb: (d, 0)))
            args.append(b)
            block_shapes.append((td, W))
        out_specs = pl.BlockSpec((TB, td, W), lambda d, bb: (bb, d, 0))

        vmem_limit = int(min(48 * 1024 * 1024,
                             max(16 * 1024 * 1024, 2 * _vmem_estimate(block_shapes, 4))))
        return pl.pallas_call(
            _mxu_kernel(use_bias),
            out_shape=jax.ShapeDtypeStruct((B, D, W), out_dtype),
            grid_spec=pltpu.PrefetchScalarGridSpec(
                num_scalar_prefetch=0,
                grid=(n_d, n_b),
                in_specs=in_specs,
                out_specs=out_specs),
            compiler_params=pltpu.CompilerParams(
                dimension_semantics=("parallel", "arbitrary"),
                vmem_limit_bytes=vmem_limit),
            cost_estimate=cost,
        )(*args)

    # ---- D-on-lanes VPU path (small K/W): lane-dense tiles and stores ----
    xt = jnp.transpose(x.reshape(B, D, K), (0, 2, 1))   # (B, K, D) layout plumbing
    wt = jnp.transpose(w, (1, 2, 0))                    # (K, W, D)
    TB, td = _pick_tiles_lane(D, B, K, W, itemsize)
    n_d, n_b = pl.cdiv(D, td), pl.cdiv(B, TB)

    block_shapes = [(TB, K, td), (K, W, td), (TB, W, td)]
    in_specs = [pl.BlockSpec((TB, K, td), lambda d, bb: (bb, 0, d)),
                pl.BlockSpec((K, W, td), lambda d, bb: (0, 0, d))]
    args = [xt, wt]
    if use_bias:
        in_specs.append(pl.BlockSpec((W, td), lambda d, bb: (0, d)))
        args.append(jnp.transpose(b, (1, 0)))           # (W, D)
        block_shapes.append((W, td))
    out_specs = pl.BlockSpec((TB, W, td), lambda d, bb: (bb, 0, d))

    vmem_limit = int(min(48 * 1024 * 1024,
                         max(16 * 1024 * 1024, 2 * _vmem_estimate(block_shapes, 4))))
    out_t = pl.pallas_call(
        _lane_kernel(use_bias, unroll_k=(K <= 64)),
        out_shape=jax.ShapeDtypeStruct((B, W, D), out_dtype),
        grid_spec=pltpu.PrefetchScalarGridSpec(
            num_scalar_prefetch=0,
            grid=(n_d, n_b),
            in_specs=in_specs,
            out_specs=out_specs),
        compiler_params=pltpu.CompilerParams(
            dimension_semantics=("parallel", "arbitrary"),
            vmem_limit_bytes=vmem_limit),
        cost_estimate=cost,
    )(*args)
    return jnp.transpose(out_t, (0, 2, 1))              # back to (B, D, W)


if __name__ == "__main__":
    def reference(x, w, b, use_bias):
        xf = x[:, :, 0, :].astype(jnp.float32)
        out = jnp.einsum("bdk,dkw->bdw", xf, w.astype(jnp.float32),
                         precision=jax.lax.Precision.HIGHEST)
        if use_bias:
            out = out + b.astype(jnp.float32)[None, :, :]
        return jnp.maximum(out, 0.0)

    # Small shapes consistent with the module: batch=2, num_input_dim=4,
    # window_size = output_size = 16 (the bias broadcast requires they match).
    B, D, K, W = 2, 4, 16, 16
    kx, kw, kb = jax.random.split(jax.random.PRNGKey(0), 3)
    w = 0.05 * jax.random.normal(kw, (D, K, W), dtype=jnp.float32)
    b = 0.1 * jax.random.normal(kb, (D, K), dtype=jnp.float32)
    x = jax.random.normal(kx, (B, D, 1, K), dtype=jnp.float32)

    out = jax.block_until_ready(sep_dense_forward(x, w, b, use_bias=True))
    assert out.shape == (B, D, W) and out.dtype == jnp.float32
    assert jnp.allclose(out, reference(x, w, b, True), atol=1e-5, rtol=1e-5), "bias path mismatch"

    out_nb = jax.block_until_ready(sep_dense_forward(x, w, use_bias=False))
    assert jnp.allclose(out_nb, reference(x, w, None, False), atol=1e-5, rtol=1e-5), \
        "no-bias path mismatch"

    # Native bf16 in -> bf16 out (no wrapper up-cast; halves the streamed bytes).
    xb, wb, bb = x.astype(jnp.bfloat16), w.astype(jnp.bfloat16), b.astype(jnp.bfloat16)
    out_bf = jax.block_until_ready(sep_dense_forward(xb, wb, bb, use_bias=True))
    assert out_bf.dtype == jnp.bfloat16
    assert jnp.allclose(out_bf.astype(jnp.float32), reference(xb, wb, bb, True),
                        atol=3e-2, rtol=3e-2), "bf16 path mismatch"

    # MXU einsum path (exercised when B >= 128 and W >= 128).
    B2, D2, K2, W2 = 128, 8, 128, 128
    kx2, kw2, kb2 = jax.random.split(jax.random.PRNGKey(1), 3)
    w2 = 0.05 * jax.random.normal(kw2, (D2, K2, W2), dtype=jnp.float32)
    b2 = 0.1 * jax.random.normal(kb2, (D2, K2), dtype=jnp.float32)
    x2 = jax.random.normal(kx2, (B2, D2, 1, K2), dtype=jnp.float32)
    out2 = jax.block_until_ready(sep_dense_forward(x2, w2, b2, use_bias=True))
    assert out2.shape == (B2, D2, W2)
    assert jnp.allclose(out2, reference(x2, w2, b2, True), atol=2e-2, rtol=2e-2), \
        "MXU path mismatch"

    print("KERNEL_OK")
</pallas_src>

<mosaic_0001>
module attributes {stable_mosaic.version = 11 : i64} {
  func.func @kernel(%arg0: i32, %arg1: i32, %arg2: memref<2x16x4xf32, #tpu.memory_space<vmem>>, %arg3: memref<16x16x4xf32, #tpu.memory_space<vmem>>, %arg4: memref<16x4xf32, #tpu.memory_space<vmem>>, %arg5: memref<2x16x4xf32, #tpu.memory_space<vmem>>) attributes {dimension_semantics = [#tpu.dimension_semantics<parallel>, #tpu.dimension_semantics<arbitrary>], iteration_bounds = array<i64: 1, 1>, scalar_prefetch = 0 : i64, scratch_operands = 0 : i64, tpu.core_type = #tpu.core_type<tc>, window_params = [{transform_indices = @transform_0, window_bounds = array<i64: 2, 16, 4>}, {transform_indices = @transform_1, window_bounds = array<i64: 16, 16, 4>}, {transform_indices = @transform_2, window_bounds = array<i64: 16, 4>}, {transform_indices = @transform_3, window_bounds = array<i64: 2, 16, 4>}]} {
    %c0 = arith.constant 0 : index
    %c0_0 = arith.constant 0 : index
    %c0_1 = arith.constant 0 : index
    %0 = vector.load %arg2[%c0, %c0_0, %c0_1] : memref<2x16x4xf32, #tpu.memory_space<vmem>>, vector<2x16x4xf32>
    %c0_2 = arith.constant 0 : index
    %c0_3 = arith.constant 0 : index
    %c0_4 = arith.constant 0 : index
    %1 = vector.load %arg3[%c0_2, %c0_3, %c0_4] : memref<16x16x4xf32, #tpu.memory_space<vmem>>, vector<16x16x4xf32>
    %2 = vector.extract_strided_slice %0 {offsets = [0, 0, 0], sizes = [2, 1, 4], strides = [1, 1, 1]} : vector<2x16x4xf32> to vector<2x1x4xf32>
    %3 = vector.extract_strided_slice %1 {offsets = [0, 0, 0], sizes = [1, 16, 4], strides = [1, 1, 1]} : vector<16x16x4xf32> to vector<1x16x4xf32>
    %4 = vector.broadcast %2 : vector<2x1x4xf32> to vector<2x16x4xf32>
    %5 = vector.broadcast %3 : vector<1x16x4xf32> to vector<2x16x4xf32>
    %6 = arith.mulf %4, %5 : vector<2x16x4xf32>
    %7 = vector.extract_strided_slice %0 {offsets = [0, 1, 0], sizes = [2, 1, 4], strides = [1, 1, 1]} : vector<2x16x4xf32> to vector<2x1x4xf32>
    %8 = vector.extract_strided_slice %1 {offsets = [1, 0, 0], sizes = [1, 16, 4], strides = [1, 1, 1]} : vector<16x16x4xf32> to vector<1x16x4xf32>
    %9 = vector.broadcast %7 : vector<2x1x4xf32> to vector<2x16x4xf32>
    %10 = vector.broadcast %8 : vector<1x16x4xf32> to vector<2x16x4xf32>
    %11 = arith.mulf %9, %10 : vector<2x16x4xf32>
    %12 = arith.addf %6, %11 : vector<2x16x4xf32>
    %13 = vector.extract_strided_slice %0 {offsets = [0, 2, 0], sizes = [2, 1, 4], strides = [1, 1, 1]} : vector<2x16x4xf32> to vector<2x1x4xf32>
    %14 = vector.extract_strided_slice %1 {offsets = [2, 0, 0], sizes = [1, 16, 4], strides = [1, 1, 1]} : vector<16x16x4xf32> to vector<1x16x4xf32>
    %15 = vector.broadcast %13 : vector<2x1x4xf32> to vector<2x16x4xf32>
    %16 = vector.broadcast %14 : vector<1x16x4xf32> to vector<2x16x4xf32>
    %17 = arith.mulf %15, %16 : vector<2x16x4xf32>
    %18 = arith.addf %12, %17 : vector<2x16x4xf32>
    %19 = vector.extract_strided_slice %0 {offsets = [0, 3, 0], sizes = [2, 1, 4], strides = [1, 1, 1]} : vector<2x16x4xf32> to vector<2x1x4xf32>
    %20 = vector.extract_strided_slice %1 {offsets = [3, 0, 0], sizes = [1, 16, 4], strides = [1, 1, 1]} : vector<16x16x4xf32> to vector<1x16x4xf32>
    %21 = vector.broadcast %19 : vector<2x1x4xf32> to vector<2x16x4xf32>
    %22 = vector.broadcast %20 : vector<1x16x4xf32> to vector<2x16x4xf32>
    %23 = arith.mulf %21, %22 : vector<2x16x4xf32>
    %24 = arith.addf %18, %23 : vector<2x16x4xf32>
    %25 = vector.extract_strided_slice %0 {offsets = [0, 4, 0], sizes = [2, 1, 4], strides = [1, 1, 1]} : vector<2x16x4xf32> to vector<2x1x4xf32>
    %26 = vector.extract_strided_slice %1 {offsets = [4, 0, 0], sizes = [1, 16, 4], strides = [1, 1, 1]} : vector<16x16x4xf32> to vector<1x16x4xf32>
    %27 = vector.broadcast %25 : vector<2x1x4xf32> to vector<2x16x4xf32>
    %28 = vector.broadcast %26 : vector<1x16x4xf32> to vector<2x16x4xf32>
    %29 = arith.mulf %27, %28 : vector<2x16x4xf32>
    %30 = arith.addf %24, %29 : vector<2x16x4xf32>
    %31 = vector.extract_strided_slice %0 {offsets = [0, 5, 0], sizes = [2, 1, 4], strides = [1, 1, 1]} : vector<2x16x4xf32> to vector<2x1x4xf32>
    %32 = vector.extract_strided_slice %1 {offsets = [5, 0, 0], sizes = [1, 16, 4], strides = [1, 1, 1]} : vector<16x16x4xf32> to vector<1x16x4xf32>
    %33 = vector.broadcast %31 : vector<2x1x4xf32> to vector<2x16x4xf32>
    %34 = vector.broadcast %32 : vector<1x16x4xf32> to vector<2x16x4xf32>
    %35 = arith.mulf %33, %34 : vector<2x16x4xf32>
    %36 = arith.addf %30, %35 : vector<2x16x4xf32>
    %37 = vector.extract_strided_slice %0 {offsets = [0, 6, 0], sizes = [2, 1, 4], strides = [1, 1, 1]} : vector<2x16x4xf32> to vector<2x1x4xf32>
    %38 = vector.extract_strided_slice %1 {offsets = [6, 0, 0], sizes = [1, 16, 4], strides = [1, 1, 1]} : vector<16x16x4xf32> to vector<1x16x4xf32>
    %39 = vector.broadcast %37 : vector<2x1x4xf32> to vector<2x16x4xf32>
    %40 = vector.broadcast %38 : vector<1x16x4xf32> to vector<2x16x4xf32>
    %41 = arith.mulf %39, %40 : vector<2x16x4xf32>
    %42 = arith.addf %36, %41 : vector<2x16x4xf32>
    %43 = vector.extract_strided_slice %0 {offsets = [0, 7, 0], sizes = [2, 1, 4], strides = [1, 1, 1]} : vector<2x16x4xf32> to vector<2x1x4xf32>
    %44 = vector.extract_strided_slice %1 {offsets = [7, 0, 0], sizes = [1, 16, 4], strides = [1, 1, 1]} : vector<16x16x4xf32> to vector<1x16x4xf32>
    %45 = vector.broadcast %43 : vector<2x1x4xf32> to vector<2x16x4xf32>
    %46 = vector.broadcast %44 : vector<1x16x4xf32> to vector<2x16x4xf32>
    %47 = arith.mulf %45, %46 : vector<2x16x4xf32>
    %48 = arith.addf %42, %47 : vector<2x16x4xf32>
    %49 = vector.extract_strided_slice %0 {offsets = [0, 8, 0], sizes = [2, 1, 4], strides = [1, 1, 1]} : vector<2x16x4xf32> to vector<2x1x4xf32>
    %50 = vector.extract_strided_slice %1 {offsets = [8, 0, 0], sizes = [1, 16, 4], strides = [1, 1, 1]} : vector<16x16x4xf32> to vector<1x16x4xf32>
    %51 = vector.broadcast %49 : vector<2x1x4xf32> to vector<2x16x4xf32>
    %52 = vector.broadcast %50 : vector<1x16x4xf32> to vector<2x16x4xf32>
    %53 = arith.mulf %51, %52 : vector<2x16x4xf32>
    %54 = arith.addf %48, %53 : vector<2x16x4xf32>
    %55 = vector.extract_strided_slice %0 {offsets = [0, 9, 0], sizes = [2, 1, 4], strides = [1, 1, 1]} : vector<2x16x4xf32> to vector<2x1x4xf32>
    %56 = vector.extract_strided_slice %1 {offsets = [9, 0, 0], sizes = [1, 16, 4], strides = [1, 1, 1]} : vector<16x16x4xf32> to vector<1x16x4xf32>
    %57 = vector.broadcast %55 : vector<2x1x4xf32> to vector<2x16x4xf32>
    %58 = vector.broadcast %56 : vector<1x16x4xf32> to vector<2x16x4xf32>
    %59 = arith.mulf %57, %58 : vector<2x16x4xf32>
    %60 = arith.addf %54, %59 : vector<2x16x4xf32>
    %61 = vector.extract_strided_slice %0 {offsets = [0, 10, 0], sizes = [2, 1, 4], strides = [1, 1, 1]} : vector<2x16x4xf32> to vector<2x1x4xf32>
    %62 = vector.extract_strided_slice %1 {offsets = [10, 0, 0], sizes = [1, 16, 4], strides = [1, 1, 1]} : vector<16x16x4xf32> to vector<1x16x4xf32>
    %63 = vector.broadcast %61 : vector<2x1x4xf32> to vector<2x16x4xf32>
    %64 = vector.broadcast %62 : vector<1x16x4xf32> to vector<2x16x4xf32>
    %65 = arith.mulf %63, %64 : vector<2x16x4xf32>
    %66 = arith.addf %60, %65 : vector<2x16x4xf32>
    %67 = vector.extract_strided_slice %0 {offsets = [0, 11, 0], sizes = [2, 1, 4], strides = [1, 1, 1]} : vector<2x16x4xf32> to vector<2x1x4xf32>
    %68 = vector.extract_strided_slice %1 {offsets = [11, 0, 0], sizes = [1, 16, 4], strides = [1, 1, 1]} : vector<16x16x4xf32> to vector<1x16x4xf32>
    %69 = vector.broadcast %67 : vector<2x1x4xf32> to vector<2x16x4xf32>
    %70 = vector.broadcast %68 : vector<1x16x4xf32> to vector<2x16x4xf32>
    %71 = arith.mulf %69, %70 : vector<2x16x4xf32>
    %72 = arith.addf %66, %71 : vector<2x16x4xf32>
    %73 = vector.extract_strided_slice %0 {offsets = [0, 12, 0], sizes = [2, 1, 4], strides = [1, 1, 1]} : vector<2x16x4xf32> to vector<2x1x4xf32>
    %74 = vector.extract_strided_slice %1 {offsets = [12, 0, 0], sizes = [1, 16, 4], strides = [1, 1, 1]} : vector<16x16x4xf32> to vector<1x16x4xf32>
    %75 = vector.broadcast %73 : vector<2x1x4xf32> to vector<2x16x4xf32>
    %76 = vector.broadcast %74 : vector<1x16x4xf32> to vector<2x16x4xf32>
    %77 = arith.mulf %75, %76 : vector<2x16x4xf32>
    %78 = arith.addf %72, %77 : vector<2x16x4xf32>
    %79 = vector.extract_strided_slice %0 {offsets = [0, 13, 0], sizes = [2, 1, 4], strides = [1, 1, 1]} : vector<2x16x4xf32> to vector<2x1x4xf32>
    %80 = vector.extract_strided_slice %1 {offsets = [13, 0, 0], sizes = [1, 16, 4], strides = [1, 1, 1]} : vector<16x16x4xf32> to vector<1x16x4xf32>
    %81 = vector.broadcast %79 : vector<2x1x4xf32> to vector<2x16x4xf32>
    %82 = vector.broadcast %80 : vector<1x16x4xf32> to vector<2x16x4xf32>
    %83 = arith.mulf %81, %82 : vector<2x16x4xf32>
    %84 = arith.addf %78, %83 : vector<2x16x4xf32>
    %85 = vector.extract_strided_slice %0 {offsets = [0, 14, 0], sizes = [2, 1, 4], strides = [1, 1, 1]} : vector<2x16x4xf32> to vector<2x1x4xf32>
    %86 = vector.extract_strided_slice %1 {offsets = [14, 0, 0], sizes = [1, 16, 4], strides = [1, 1, 1]} : vector<16x16x4xf32> to vector<1x16x4xf32>
    %87 = vector.broadcast %85 : vector<2x1x4xf32> to vector<2x16x4xf32>
    %88 = vector.broadcast %86 : vector<1x16x4xf32> to vector<2x16x4xf32>
    %89 = arith.mulf %87, %88 : vector<2x16x4xf32>
    %90 = arith.addf %84, %89 : vector<2x16x4xf32>
    %91 = vector.extract_strided_slice %0 {offsets = [0, 15, 0], sizes = [2, 1, 4], strides = [1, 1, 1]} : vector<2x16x4xf32> to vector<2x1x4xf32>
    %92 = vector.extract_strided_slice %1 {offsets = [15, 0, 0], sizes = [1, 16, 4], strides = [1, 1, 1]} : vector<16x16x4xf32> to vector<1x16x4xf32>
    %93 = vector.broadcast %91 : vector<2x1x4xf32> to vector<2x16x4xf32>
    %94 = vector.broadcast %92 : vector<1x16x4xf32> to vector<2x16x4xf32>
    %95 = arith.mulf %93, %94 : vector<2x16x4xf32>
    %96 = arith.addf %90, %95 : vector<2x16x4xf32>
    %c0_5 = arith.constant 0 : index
    %c0_6 = arith.constant 0 : index
    %97 = vector.load %arg4[%c0_5, %c0_6] : memref<16x4xf32, #tpu.memory_space<vmem>>, vector<16x4xf32>
    %98 = vector.shape_cast %97 : vector<16x4xf32> to vector<1x16x4xf32>
    %99 = vector.broadcast %98 : vector<1x16x4xf32> to vector<2x16x4xf32>
    %100 = arith.addf %96, %99 : vector<2x16x4xf32>
    %cst = arith.constant 0.000000e+00 : f32
    %101 = vector.broadcast %cst : f32 to vector<2x16x4xf32>
    %102 = arith.maximumf %100, %101 : vector<2x16x4xf32>
    %c0_7 = arith.constant 0 : index
    %c0_8 = arith.constant 0 : index
    %c0_9 = arith.constant 0 : index
    %103 = vector.load %arg5[%c0_7, %c0_8, %c0_9] : memref<2x16x4xf32, #tpu.memory_space<vmem>>, vector<2x16x4xf32>
    tpu.vector_store %arg5[%c0_7, %c0_8, %c0_9], %102 {strides = array<i32>} : memref<2x16x4xf32, #tpu.memory_space<vmem>>, vector<2x16x4xf32>,
    return
  }
  func.func @transform_0(%arg0: i32, %arg1: i32) -> (i32, i32, i32) {
    %c0_i32 = arith.constant 0 : i32
    %c0_i32_0 = arith.constant 0 : i32
    return %arg1, %c0_i32, %arg0 : i32, i32, i32
  }
  func.func @transform_1(%arg0: i32, %arg1: i32) -> (i32, i32, i32) {
    %c0_i32 = arith.constant 0 : i32
    %c0_i32_0 = arith.constant 0 : i32
    %c0_i32_1 = arith.constant 0 : i32
    return %c0_i32, %c0_i32_0, %arg0 : i32, i32, i32
  }
  func.func @transform_2(%arg0: i32, %arg1: i32) -> (i32, i32) {
    %c0_i32 = arith.constant 0 : i32
    %c0_i32_0 = arith.constant 0 : i32
    return %c0_i32, %arg0 : i32, i32
  }
  func.func @transform_3(%arg0: i32, %arg1: i32) -> (i32, i32, i32) {
    %c0_i32 = arith.constant 0 : i32
    %c0_i32_0 = arith.constant 0 : i32
    return %arg1, %c0_i32, %arg0 : i32, i32, i32
  }
}

</mosaic_0001>

<llo_original>
// kernel: tpu_custom_call.1
$region0: #{tpu_custom_call.1}
  #allocation0 [shape = 'u32[]', space=smem, size = 0x4, offset = 0x4, fixed_abs, tag = 'smem constant byte address 0x4 - core index']
  #allocation1 [shape = 'u32[144,128]{1,0:T(1,128)}', space=vmem, size = 0x12000, scoped, tag = 'internal scratch']
  %s0 = inlined_call_operand.vmem [shape: f32[2,16,4], index: 0, kind: input, shape index: {}]
  %s1 = inlined_call_operand.vmem [shape: f32[16,16,4], index: 1, kind: input, shape index: {}]
  %s2 = inlined_call_operand.vmem [shape: f32[16,4], index: 2, kind: input, shape index: {}]
  %s3 = inlined_call_operand.vmem [shape: f32[2,16,4], index: 3, kind: output, shape index: {}]
  %s4 = sld [smem:[#allocation0]]
  $region22: #{tpu_custom_call.1} parent=0
    _
  %s6 = ssub.s32 1, %s4
  %s7 = scalar_select 0, %s6, %s4
  // Predicated region
  $region2: #{tpu_custom_call.1} parent=0 // pred_check
    _
  $region3: #{tpu_custom_call.1} parent=0 // pred_check_branch
    %9 = sbr.rel (0) target = $region5
  $region4: #{tpu_custom_call.1} parent=0 // pred_region
    _
  $region5: #{tpu_custom_call.1} parent=0 // pred_fallthru
    _
  // Predicated region
  $region6: #{tpu_custom_call.1} parent=0 // pred_check
    _
  $region7: #{tpu_custom_call.1} parent=0 // pred_check_branch
    %11 = sbr.rel (0) target = $region9
  $region8: #{tpu_custom_call.1} parent=0 // pred_region
    _
  $region9: #{tpu_custom_call.1} parent=0 // pred_fallthru
    _
  // Predicated region
  $region10: #{tpu_custom_call.1} parent=0 // pred_check
    _
  $region11: #{tpu_custom_call.1} parent=0 // pred_check_branch
    %13 = sbr.rel (0) target = $region13
  $region12: #{tpu_custom_call.1} parent=0 // pred_region
    _
  $region13: #{tpu_custom_call.1} parent=0 // pred_fallthru
    _
  %v14 = vld [vmem:[%s0] sm:$0xff]
  %v15 = vld [vmem:[%s0 + $0x8] sm:$0xff]
  %v16 = vld [vmem:[%s0 + $0x10] sm:$0xff]
  %v17 = vld [vmem:[%s0 + $0x18] sm:$0xff]
  %v18 = vld [vmem:[%s1] sm:$0xff]
  %v19 = vld [vmem:[%s1 + $0x8] sm:$0xff]
  %v20 = vld [vmem:[%s1 + $0x10] sm:$0xff]
  %v21 = vld [vmem:[%s1 + $0x18] sm:$0xff]
  %v22 = vld [vmem:[%s1 + $0x20] sm:$0xff]
  %v23 = vld [vmem:[%s1 + $0x28] sm:$0xff]
  %v24 = vld [vmem:[%s1 + $0x30] sm:$0xff]
  %v25 = vld [vmem:[%s1 + $0x38] sm:$0xff]
  %v26 = vld [vmem:[%s1 + $0x40] sm:$0xff]
  %v27 = vld [vmem:[%s1 + $0x48] sm:$0xff]
  %v28 = vld [vmem:[%s1 + $0x50] sm:$0xff]
  %v29 = vld [vmem:[%s1 + $0x58] sm:$0xff]
  %v30 = vld [vmem:[%s1 + $0x60] sm:$0xff]
  %v31 = vld [vmem:[%s1 + $0x68] sm:$0xff]
  %v32 = vld [vmem:[%s1 + $0x70] sm:$0xff]
  %v33 = vld [vmem:[%s1 + $0x78] sm:$0xff]
  %v34 = vld [vmem:[%s1 + $0x80] sm:$0xff]
  %v35 = vld [vmem:[%s1 + $0x88] sm:$0xff]
  %v36 = vld [vmem:[%s1 + $0x90] sm:$0xff]
  %v37 = vld [vmem:[%s1 + $0x98] sm:$0xff]
  %v38 = vld [vmem:[%s1 + $0xa0] sm:$0xff]
  %v39 = vld [vmem:[%s1 + $0xa8] sm:$0xff]
  %v40 = vld [vmem:[%s1 + $0xb0] sm:$0xff]
  %v41 = vld [vmem:[%s1 + $0xb8] sm:$0xff]
  %v42 = vld [vmem:[%s1 + $0xc0] sm:$0xff]
  %v43 = vld [vmem:[%s1 + $0xc8] sm:$0xff]
  %v44 = vld [vmem:[%s1 + $0xd0] sm:$0xff]
  %v45 = vld [vmem:[%s1 + $0xd8] sm:$0xff]
  %v46 = vld [vmem:[%s1 + $0xe0] sm:$0xff]
  %v47 = vld [vmem:[%s1 + $0xe8] sm:$0xff]
  %v48 = vld [vmem:[%s1 + $0xf0] sm:$0xff]
  %v49 = vld [vmem:[%s1 + $0xf8] sm:$0xff]
  %v50 = vlaneseq
  %v51 = vshrl.u32 %v50, 7
  %v52 = vsub.s32 0, %v51
  %v53 = vrot.slane %v14, %v52
  %v54 = vlaneseq
  %v55 = vshrl.u32 %v54, 7
  %v56 = vsub.s32 0, %v55
  %v57 = vrot.slane %v16, %v56
  %v58 = vmul.f32 %v53, %v18
  %v59 = vmul.f32 %v53, %v19
  %v60 = vmul.f32 %v57, %v18
  %v61 = vmul.f32 %v57, %v19
  %v62 = vlaneseq
  %v63 = vshrl.u32 %v62, 7
  %v64 = vsub.s32 1, %v63
  %v65 = vrot.slane %v14, %v64
  %v66 = vlaneseq
  %v67 = vshrl.u32 %v66, 7
  %v68 = vsub.s32 1, %v67
  %v69 = vrot.slane %v16, %v68
  %v70 = vmul.f32 %v65, %v20
  %v71 = vmul.f32 %v65, %v21
  %v72 = vmul.f32 %v69, %v20
  %v73 = vmul.f32 %v69, %v21
  %v74 = vadd.f32 %v58, %v70
  %v75 = vadd.f32 %v59, %v71
  %v76 = vadd.f32 %v60, %v72
  %v77 = vadd.f32 %v61, %v73
  %v78 = vlaneseq
  %v79 = vshrl.u32 %v78, 7
  %v80 = vsub.s32 2, %v79
  %v81 = vrot.slane %v14, %v80
  %v82 = vlaneseq
  %v83 = vshrl.u32 %v82, 7
  %v84 = vsub.s32 2, %v83
  %v85 = vrot.slane %v16, %v84
  %v86 = vmul.f32 %v81, %v22
  %v87 = vmul.f32 %v81, %v23
  %v88 = vmul.f32 %v85, %v22
  %v89 = vmul.f32 %v85, %v23
  %v90 = vadd.f32 %v74, %v86
  %v91 = vadd.f32 %v75, %v87
  %v92 = vadd.f32 %v76, %v88
  %v93 = vadd.f32 %v77, %v89
  %v94 = vlaneseq
  %v95 = vshrl.u32 %v94, 7
  %v96 = vsub.s32 3, %v95
  %v97 = vrot.slane %v14, %v96
  %v98 = vlaneseq
  %v99 = vshrl.u32 %v98, 7
  %v100 = vsub.s32 3, %v99
  %v101 = vrot.slane %v16, %v100
  %v102 = vmul.f32 %v97, %v24
  %v103 = vmul.f32 %v97, %v25
  %v104 = vmul.f32 %v101, %v24
  %v105 = vmul.f32 %v101, %v25
  %v106 = vadd.f32 %v90, %v102
  %v107 = vadd.f32 %v91, %v103
  %v108 = vadd.f32 %v92, %v104
  %v109 = vadd.f32 %v93, %v105
  %v110 = vlaneseq
  %v111 = vshrl.u32 %v110, 7
  %v112 = vsub.s32 4, %v111
  %v113 = vrot.slane %v14, %v112
  %v114 = vlaneseq
  %v115 = vshrl.u32 %v114, 7
  %v116 = vsub.s32 4, %v115
  %v117 = vrot.slane %v16, %v116
  %v118 = vmul.f32 %v113, %v26
  %v119 = vmul.f32 %v113, %v27
  %v120 = vmul.f32 %v117, %v26
  %v121 = vmul.f32 %v117, %v27
  %v122 = vadd.f32 %v106, %v118
  %v123 = vadd.f32 %v107, %v119
  %v124 = vadd.f32 %v108, %v120
  %v125 = vadd.f32 %v109, %v121
  %v126 = vlaneseq
  %v127 = vshrl.u32 %v126, 7
  %v128 = vsub.s32 5, %v127
  %v129 = vrot.slane %v14, %v128
  %v130 = vlaneseq
  %v131 = vshrl.u32 %v130, 7
  %v132 = vsub.s32 5, %v131
  %v133 = vrot.slane %v16, %v132
  %v134 = vmul.f32 %v129, %v28
  %v135 = vmul.f32 %v129, %v29
  %v136 = vmul.f32 %v133, %v28
  %v137 = vmul.f32 %v133, %v29
  %v138 = vadd.f32 %v122, %v134
  %v139 = vadd.f32 %v123, %v135
  %v140 = vadd.f32 %v124, %v136
  %v141 = vadd.f32 %v125, %v137
  %v142 = vlaneseq
  %v143 = vshrl.u32 %v142, 7
  %v144 = vsub.s32 6, %v143
  %v145 = vrot.slane %v14, %v144
  %v146 = vlaneseq
  %v147 = vshrl.u32 %v146, 7
  %v148 = vsub.s32 6, %v147
  %v149 = vrot.slane %v16, %v148
  %v150 = vmul.f32 %v145, %v30
  %v151 = vmul.f32 %v145, %v31
  %v152 = vmul.f32 %v149, %v30
  %v153 = vmul.f32 %v149, %v31
  %v154 = vadd.f32 %v138, %v150
  %v155 = vadd.f32 %v139, %v151
  %v156 = vadd.f32 %v140, %v152
  %v157 = vadd.f32 %v141, %v153
  %v158 = vlaneseq
  %v159 = vshrl.u32 %v158, 7
  %v160 = vsub.s32 7, %v159
  %v161 = vrot.slane %v14, %v160
  %v162 = vlaneseq
  %v163 = vshrl.u32 %v162, 7
  %v164 = vsub.s32 7, %v163
  %v165 = vrot.slane %v16, %v164
  %v166 = vmul.f32 %v161, %v32
  %v167 = vmul.f32 %v161, %v33
  %v168 = vmul.f32 %v165, %v32
  %v169 = vmul.f32 %v165, %v33
  %v170 = vadd.f32 %v154, %v166
  %v171 = vadd.f32 %v155, %v167
  %v172 = vadd.f32 %v156, %v168
  %v173 = vadd.f32 %v157, %v169
  %v174 = vlaneseq
  %v175 = vshrl.u32 %v174, 7
  %v176 = vsub.s32 0, %v175
  %v177 = vrot.slane %v15, %v176
  %v178 = vlaneseq
  %v179 = vshrl.u32 %v178, 7
  %v180 = vsub.s32 0, %v179
  %v181 = vrot.slane %v17, %v180
  %v182 = vmul.f32 %v177, %v34
  %v183 = vmul.f32 %v177, %v35
  %v184 = vmul.f32 %v181, %v34
  %v185 = vmul.f32 %v181, %v35
  %v186 = vadd.f32 %v170, %v182
  %v187 = vadd.f32 %v171, %v183
  %v188 = vadd.f32 %v172, %v184
  %v189 = vadd.f32 %v173, %v185
  %v190 = vlaneseq
  %v191 = vshrl.u32 %v190, 7
  %v192 = vsub.s32 1, %v191
  %v193 = vrot.slane %v15, %v192
  %v194 = vlaneseq
  %v195 = vshrl.u32 %v194, 7
  %v196 = vsub.s32 1, %v195
  %v197 = vrot.slane %v17, %v196
  %v198 = vmul.f32 %v193, %v36
  %v199 = vmul.f32 %v193, %v37
  %v200 = vmul.f32 %v197, %v36
  %v201 = vmul.f32 %v197, %v37
  %v202 = vadd.f32 %v186, %v198
  %v203 = vadd.f32 %v187, %v199
  %v204 = vadd.f32 %v188, %v200
  %v205 = vadd.f32 %v189, %v201
  %v206 = vlaneseq
  %v207 = vshrl.u32 %v206, 7
  %v208 = vsub.s32 2, %v207
  %v209 = vrot.slane %v15, %v208
  %v210 = vlaneseq
  %v211 = vshrl.u32 %v210, 7
  %v212 = vsub.s32 2, %v211
  %v213 = vrot.slane %v17, %v212
  %v214 = vmul.f32 %v209, %v38
  %v215 = vmul.f32 %v209, %v39
  %v216 = vmul.f32 %v213, %v38
  %v217 = vmul.f32 %v213, %v39
  %v218 = vadd.f32 %v202, %v214
  %v219 = vadd.f32 %v203, %v215
  %v220 = vadd.f32 %v204, %v216
  %v221 = vadd.f32 %v205, %v217
  %v222 = vlaneseq
  %v223 = vshrl.u32 %v222, 7
  %v224 = vsub.s32 3, %v223
  %v225 = vrot.slane %v15, %v224
  %v226 = vlaneseq
  %v227 = vshrl.u32 %v226, 7
  %v228 = vsub.s32 3, %v227
  %v229 = vrot.slane %v17, %v228
  %v230 = vmul.f32 %v225, %v40
  %v231 = vmul.f32 %v225, %v41
  %v232 = vmul.f32 %v229, %v40
  %v233 = vmul.f32 %v229, %v41
  %v234 = vadd.f32 %v218, %v230
  %v235 = vadd.f32 %v219, %v231
  %v236 = vadd.f32 %v220, %v232
  %v237 = vadd.f32 %v221, %v233
  %v238 = vlaneseq
  %v239 = vshrl.u32 %v238, 7
  %v240 = vsub.s32 4, %v239
  %v241 = vrot.slane %v15, %v240
  %v242 = vlaneseq
  %v243 = vshrl.u32 %v242, 7
  %v244 = vsub.s32 4, %v243
  %v245 = vrot.slane %v17, %v244
  %v246 = vmul.f32 %v241, %v42
  %v247 = vmul.f32 %v241, %v43
  %v248 = vmul.f32 %v245, %v42
  %v249 = vmul.f32 %v245, %v43
  %v250 = vadd.f32 %v234, %v246
  %v251 = vadd.f32 %v235, %v247
  %v252 = vadd.f32 %v236, %v248
  %v253 = vadd.f32 %v237, %v249
  %v254 = vlaneseq
  %v255 = vshrl.u32 %v254, 7
  %v256 = vsub.s32 5, %v255
  %v257 = vrot.slane %v15, %v256
  %v258 = vlaneseq
  %v259 = vshrl.u32 %v258, 7
  %v260 = vsub.s32 5, %v259
  %v261 = vrot.slane %v17, %v260
  %v262 = vmul.f32 %v257, %v44
  %v263 = vmul.f32 %v257, %v45
  %v264 = vmul.f32 %v261, %v44
  %v265 = vmul.f32 %v261, %v45
  %v266 = vadd.f32 %v250, %v262
  %v267 = vadd.f32 %v251, %v263
  %v268 = vadd.f32 %v252, %v264
  %v269 = vadd.f32 %v253, %v265
  %v270 = vlaneseq
  %v271 = vshrl.u32 %v270, 7
  %v272 = vsub.s32 6, %v271
  %v273 = vrot.slane %v15, %v272
  %v274 = vlaneseq
  %v275 = vshrl.u32 %v274, 7
  %v276 = vsub.s32 6, %v275
  %v277 = vrot.slane %v17, %v276
  %v278 = vmul.f32 %v273, %v46
  %v279 = vmul.f32 %v273, %v47
  %v280 = vmul.f32 %v277, %v46
  %v281 = vmul.f32 %v277, %v47
  %v282 = vadd.f32 %v266, %v278
  %v283 = vadd.f32 %v267, %v279
  %v284 = vadd.f32 %v268, %v280
  %v285 = vadd.f32 %v269, %v281
  %v286 = vlaneseq
  %v287 = vshrl.u32 %v286, 7
  %v288 = vsub.s32 7, %v287
  %v289 = vrot.slane %v15, %v288
  %v290 = vlaneseq
  %v291 = vshrl.u32 %v290, 7
  %v292 = vsub.s32 7, %v291
  %v293 = vrot.slane %v17, %v292
  %v294 = vmul.f32 %v289, %v48
  %v295 = vmul.f32 %v289, %v49
  %v296 = vmul.f32 %v293, %v48
  %v297 = vmul.f32 %v293, %v49
  %v298 = vadd.f32 %v282, %v294
  %v299 = vadd.f32 %v283, %v295
  %v300 = vadd.f32 %v284, %v296
  %v301 = vadd.f32 %v285, %v297
  %v302 = vld [vmem:[%s2] sm:$0xff]
  %v303 = vld [vmem:[%s2 + $0x8] sm:$0xff]
  %v304 = vadd.f32 %v298, %v302
  %v305 = vadd.f32 %v299, %v303
  %v306 = vadd.f32 %v300, %v302
  %v307 = vadd.f32 %v301, %v303
  %v308 = vmax.f32 %v304, 0.0
  %v309 = vmax.f32 %v305, 0.0
  %v310 = vmax.f32 %v306, 0.0
  %v311 = vmax.f32 %v307, 0.0
  %vm312 = vcmask 31744
  %313 = vst.msk [vmem:[%s3] sm:$0xff] %vm312, %v308
  %314 = vst.msk [vmem:[%s3 + $0x8] sm:$0xff] %vm312, %v309
  %315 = vst.msk [vmem:[%s3 + $0x10] sm:$0xff] %vm312, %v310
  %316 = vst.msk [vmem:[%s3 + $0x18] sm:$0xff] %vm312, %v311
  // Predicated region
  $region14: #{tpu_custom_call.1} parent=0 // pred_check
    _
  $region15: #{tpu_custom_call.1} parent=0 // pred_check_branch
    %318 = sbr.rel (0) target = $region17
  $region16: #{tpu_custom_call.1} parent=0 // pred_region
    _
  $region17: #{tpu_custom_call.1} parent=0 // pred_fallthru
    _
  // Predicated region
  $region18: #{tpu_custom_call.1} parent=0 // pred_check
    _
  $region19: #{tpu_custom_call.1} parent=0 // pred_check_branch
    %320 = sbr.rel (0) target = $region21
  $region20: #{tpu_custom_call.1} parent=0 // pred_region
    _
  $region21: #{tpu_custom_call.1} parent=0 // pred_fallthru
    _

</llo_original>
